<compile_context>
chip_gen: v7x
topology: tpu7x:2x2x1
jax: 0.10.0
libtpu: 0.0.40
codegen_flags: <defaults>
</compile_context>

<pallas_src>
import functools

import jax
import jax.numpy as jnp
from jax.experimental import pallas as pl
from jax.experimental.pallas import tpu as pltpu


# ---------------------------------------------------------------------------
# Pass 1: MXU sufficient statistics of the input tile.
# Refs:
#   x_ref    : (bn, Cin, tp)
#   gram_ref : (Cin, Cin)   partial  sum_p x x^T   (this tile / batch block)
#   sx_ref   : (Cin, 1)     partial  sum_p x
# ---------------------------------------------------------------------------
def stats_kernel(x_ref, gram_ref, sx_ref, *, p_total, tile_p, needs_mask):
    bnb, cin, tp = x_ref.shape
    if needs_mask:
        rem = p_total - pl.program_id(1) * tile_p
        lane = jax.lax.broadcasted_iota(jnp.int32, (cin, tp), 1)
        keep = lane < rem
    gram = jnp.zeros((cin, cin), jnp.float32)
    sx = jnp.zeros((cin, 1), jnp.float32)
    for bb in range(bnb):                                  # static unroll (small)
        x = x_ref[bb].astype(jnp.float32)                  # (Cin, tp)
        if needs_mask:
            x = jnp.where(keep, x, 0.0)                    # zero padded lanes
        # Gram on the MXU with K = tp (excellent contraction shape).
        gram = gram + jax.lax.dot_general(
            x, x, (((1,), (1,)), ((), ())),
            preferred_element_type=jnp.float32)
        # Per-channel sum: XLU lane reduce, overlaps with the MXU Gram.
        sx = sx + jnp.sum(x, axis=1, keepdims=True)
    gram_ref[...] = gram
    sx_ref[...] = sx


# ---------------------------------------------------------------------------
# Pass 2: conv1x1 with BN scale folded into W and (bias + BN shift) folded
# into a single per-channel shift, then LeakyReLU.
# Refs:
#   x_ref : (bn, Cin, tp); w_ref : (Cout, Cin); shift_ref : (Cout, 1)
#   o_ref : (bn, Cout, tp)
# ---------------------------------------------------------------------------
def conv_bn_act_kernel(x_ref, w_ref, shift_ref, o_ref, *, neg_slope):
    w = w_ref[...]
    sh = shift_ref[...]
    for bb in range(x_ref.shape[0]):                       # static unroll
        y = jnp.dot(w, x_ref[bb].astype(jnp.float32),
                    preferred_element_type=jnp.float32)    # (Cout, tp)
        y = y + sh
        o_ref[bb] = jnp.where(y >= 0.0, y, neg_slope * y).astype(o_ref.dtype)


# ---------------------------------------------------------------------------
# Tile selection: byte-budgeted, cdiv-friendly, with batch blocking for small P.
# ---------------------------------------------------------------------------
def _choose_tiles(N, P, Cin, Cout, in_bytes, out_bytes, budget_bytes):
    """Return (bn, tp).

    Per-step VMEM estimate (pass 2, the larger pass):
      bn*tp * (2*Cin*in_bytes   # x, double-buffered
             + 2*Cout*out_bytes # out, double-buffered
             + Cout*4)          # f32 matmul temp
    tp is either the full P (always a legal block) or a multiple of 128.
    bn always divides N (avoids batch-axis masking in the stats pass).
    """
    per_px = 2 * Cin * in_bytes + 2 * Cout * out_bytes + Cout * 4
    max_px = max(128, budget_bytes // per_px)
    if P > max_px:
        tp = max(128, (max_px // 128) * 128)
        return 1, tp
    # Whole image fits in one tile -> also block over batch (small-P case),
    # but keep >= 2 grid steps when N >= 2 so both v7x TensorCores get work.
    tp = P
    bn_cap = max(1, max_px // P)
    if N >= 2:
        bn_cap = min(bn_cap, max(1, N // 2))
    bn = 1
    for d in range(min(N, bn_cap), 0, -1):
        if N % d == 0:
            bn = d
            break
    return bn, tp


# ---------------------------------------------------------------------------
# Wrapper
# ---------------------------------------------------------------------------
def skip_gen_forward(x_nchw, w, b, gamma, beta, *, eps=1e-5, neg_slope=0.01,
                     vmem_budget_bytes=28 * 1024 * 1024):
    """x_nchw: (N, Cin, H, W); w: (Cout, Cin) (torch conv weight squeezed);
    b/gamma/beta: (Cout,).

    vmem_budget_bytes defaults to a value safe on every generation (v7x has
    only 64 MiB VMEM per TensorCore); on v5e/v6e (128 MiB) it may be raised.
    """
    N, Cin, H, W = x_nchw.shape
    Cout = w.shape[0]
    P = H * W

    in_b = jnp.dtype(x_nchw.dtype).itemsize
    out_b = in_b
    bn, tp = _choose_tiles(N, P, Cin, Cout, in_b, out_b, vmem_budget_bytes)
    GN = N // bn
    PT = pl.cdiv(P, tp)
    needs_mask = (P % tp) != 0

    x3 = x_nchw.reshape(N, Cin, P)                 # free reshape, no transpose
    w_f = w.astype(jnp.float32)                    # (Cout, Cin)
    b_f = b.astype(jnp.float32)                    # (Cout,)

    cparams = pltpu.CompilerParams(
        dimension_semantics=("parallel", "parallel"),
        vmem_limit_bytes=vmem_budget_bytes + 20 * 1024 * 1024,
    )

    # ---- pass 1: partial Gram / channel-sum statistics of x ----------------
    gram_p, sx_p = pl.pallas_call(
        functools.partial(stats_kernel, p_total=P, tile_p=tp,
                          needs_mask=needs_mask),
        out_shape=(jax.ShapeDtypeStruct((GN, PT, Cin, Cin), jnp.float32),
                   jax.ShapeDtypeStruct((GN, PT, Cin, 1), jnp.float32)),
        grid_spec=pltpu.PrefetchScalarGridSpec(
            num_scalar_prefetch=0,
            grid=(GN, PT),
            in_specs=[pl.BlockSpec((bn, Cin, tp), lambda n, j: (n, 0, j))],
            out_specs=[
                pl.BlockSpec((None, None, Cin, Cin), lambda n, j: (n, j, 0, 0)),
                pl.BlockSpec((None, None, Cin, 1), lambda n, j: (n, j, 0, 0)),
            ],
        ),
        compiler_params=cparams,
    )(x3)

    # ---- tiny JAX glue: batch stats of y = Wx + b, fold BN + bias -----------
    m_total = float(N * P)
    G = jnp.sum(gram_p, axis=(0, 1))               # (Cin, Cin)  = sum x x^T
    sx = jnp.sum(sx_p, axis=(0, 1))[:, 0]          # (Cin,)      = sum x
    w_sx = w_f @ sx                                # (Cout,)
    mean = w_sx / m_total + b_f
    # sum(y^2) = diag(W G W^T) + 2 b (W sx) + M b^2
    sum_sq = (jnp.sum((w_f @ G) * w_f, axis=1) + 2.0 * b_f * w_sx
              + m_total * b_f * b_f)
    var = jnp.maximum(sum_sq / m_total - mean * mean, 0.0)   # biased (BN train)
    inv = jax.lax.rsqrt(var + eps)
    scale = gamma.astype(jnp.float32) * inv
    shift = beta.astype(jnp.float32) - mean * scale
    w_fold = scale[:, None] * w_f                  # BN scale folded into weight
    shift_fold = (b_f * scale + shift).reshape(Cout, 1)   # bias + BN shift

    # ---- pass 2: folded conv1x1 + LeakyReLU ----------------------------------
    out3 = pl.pallas_call(
        functools.partial(conv_bn_act_kernel, neg_slope=neg_slope),
        out_shape=jax.ShapeDtypeStruct((N, Cout, P), x_nchw.dtype),
        grid_spec=pltpu.PrefetchScalarGridSpec(
            num_scalar_prefetch=0,
            grid=(GN, PT),
            in_specs=[
                pl.BlockSpec((bn, Cin, tp), lambda n, j: (n, 0, j)),
                pl.BlockSpec((Cout, Cin), lambda n, j: (0, 0)),
                pl.BlockSpec((Cout, 1), lambda n, j: (0, 0)),
            ],
            out_specs=pl.BlockSpec((bn, Cout, tp), lambda n, j: (n, 0, j)),
        ),
        compiler_params=cparams,
    )(x3, w_fold, shift_fold)

    return out3.reshape(N, Cout, H, W)             # free reshape


# ---------------------------------------------------------------------------
# Pure-JAX reference (PyTorch semantics: Conv2d 1x1 + BN train-mode + LeakyReLU)
# TODO(synk): BatchNorm running_mean/var buffer updates (momentum) are a
# training side-effect and are not modeled; they do not affect forward output.
# ---------------------------------------------------------------------------
def skip_gen_ref(x_nchw, w, b, gamma, beta, *, eps=1e-5, neg_slope=0.01):
    N, Cin, H, W = x_nchw.shape
    Cout = w.shape[0]
    x = x_nchw.reshape(N, Cin, H * W).astype(jnp.float32)
    y = jnp.einsum("oc,ncp->nop", w.astype(jnp.float32), x) + b[None, :, None]
    mean = jnp.mean(y, axis=(0, 2), keepdims=True)
    var = jnp.mean((y - mean) ** 2, axis=(0, 2), keepdims=True)
    yn = ((y - mean) * jax.lax.rsqrt(var + eps) * gamma[None, :, None]
          + beta[None, :, None])
    o = jnp.where(yn >= 0, yn, neg_slope * yn)
    return o.reshape(N, Cout, H, W)


if __name__ == "__main__":
    key = jax.random.PRNGKey(0)
    k_x, k_w, k_b, k_g, k_be = jax.random.split(key, 5)

    N, Cin, Cout, H, Wd = 2, 8, 16, 16, 16

    x = jax.random.normal(k_x, (N, Cin, H, Wd), dtype=jnp.float32)

    # Conv2d(Cin, Cout, 1): torch weight (Cout, Cin, 1, 1) -> (Cout, Cin)
    w = (jax.random.normal(k_w, (Cout, Cin), dtype=jnp.float32)
         * (1.0 / jnp.sqrt(Cin)))
    b = jax.random.normal(k_b, (Cout,), dtype=jnp.float32) * 0.1

    # BatchNorm2d affine params (perturbed from torch defaults to exercise math)
    gamma = 1.0 + 0.1 * jax.random.normal(k_g, (Cout,), dtype=jnp.float32)
    beta = 0.1 * jax.random.normal(k_be, (Cout,), dtype=jnp.float32)

    out = skip_gen_forward(x, w, b, gamma, beta)
    out = jax.block_until_ready(out)

    ref = skip_gen_ref(x, w, b, gamma, beta)
    assert out.shape == (N, Cout, H, Wd)
    assert jnp.allclose(out, ref, atol=5e-4, rtol=5e-4)

    print("KERNEL_OK")
</pallas_src>

<mosaic_0001>
module attributes {stable_mosaic.version = 11 : i64} {
  func.func @stats_kernel(%arg0: i32, %arg1: i32, %arg2: memref<1x8x256xf32, #tpu.memory_space<vmem>>, %arg3: memref<1x1x8x8xf32, #tpu.memory_space<vmem>>, %arg4: memref<1x1x8x1xf32, #tpu.memory_space<vmem>>) attributes {dimension_semantics = [#tpu.dimension_semantics<parallel>, #tpu.dimension_semantics<parallel>], iteration_bounds = array<i64: 2, 1>, scalar_prefetch = 0 : i64, scratch_operands = 0 : i64, tpu.core_type = #tpu.core_type<tc>, window_params = [{transform_indices = @transform_0, window_bounds = array<i64: 1, 8, 256>}, {transform_indices = @transform_1, window_bounds = array<i64: 1, 1, 8, 8>}, {transform_indices = @transform_2, window_bounds = array<i64: 1, 1, 8, 1>}]} {
    %cst = arith.constant 0.000000e+00 : f32
    %0 = vector.broadcast %cst : f32 to vector<8x8xf32>
    %cst_0 = arith.constant 0.000000e+00 : f32
    %1 = vector.broadcast %cst_0 : f32 to vector<8x1xf32>
    %c0 = arith.constant 0 : index
    %c0_1 = arith.constant 0 : index
    %c0_2 = arith.constant 0 : index
    %2 = vector.load %arg2[%c0, %c0_1, %c0_2] : memref<1x8x256xf32, #tpu.memory_space<vmem>>, vector<1x8x256xf32>
    %3 = vector.shape_cast %2 : vector<1x8x256xf32> to vector<8x256xf32>
    %cst_3 = arith.constant dense<0.000000e+00> : vector<8x8xf32>
    %4 = tpu.matmul %3, %3, %cst_3 {dimension_numbers = #tpu.dot_dimension_numbers<[1], [1], [0], [0], [0, 0, 1, 0], [], []>} : vector<8x256xf32>, vector<8x256xf32>, vector<8x8xf32> -> vector<8x8xf32>
    %5 = arith.addf %0, %4 : vector<8x8xf32>
    %cst_4 = arith.constant dense<0.000000e+00> : vector<8xf32>
    %6 = vector.multi_reduction <add>, %3, %cst_4 [1] : vector<8x256xf32> to vector<8xf32>
    %7 = vector.shape_cast %6 : vector<8xf32> to vector<8x1xf32>
    %8 = arith.addf %1, %7 : vector<8x1xf32>
    %c0_5 = arith.constant 0 : index
    %c0_6 = arith.constant 0 : index
    %c0_7 = arith.constant 0 : index
    %c0_8 = arith.constant 0 : index
    %9 = vector.load %arg3[%c0_5, %c0_6, %c0_7, %c0_8] : memref<1x1x8x8xf32, #tpu.memory_space<vmem>>, vector<1x1x8x8xf32>
    %10 = vector.shape_cast %9 : vector<1x1x8x8xf32> to vector<8x8xf32>
    %11 = vector.shape_cast %5 : vector<8x8xf32> to vector<1x1x8x8xf32>
    tpu.vector_store %arg3[%c0_5, %c0_6, %c0_7, %c0_8], %11 {strides = array<i32>} : memref<1x1x8x8xf32, #tpu.memory_space<vmem>>, vector<1x1x8x8xf32>,
    %c0_9 = arith.constant 0 : index
    %c0_10 = arith.constant 0 : index
    %c0_11 = arith.constant 0 : index
    %c0_12 = arith.constant 0 : index
    %12 = vector.load %arg4[%c0_9, %c0_10, %c0_11, %c0_12] : memref<1x1x8x1xf32, #tpu.memory_space<vmem>>, vector<1x1x8x1xf32>
    %13 = vector.shape_cast %12 : vector<1x1x8x1xf32> to vector<8x1xf32>
    %14 = vector.shape_cast %8 : vector<8x1xf32> to vector<1x1x8x1xf32>
    tpu.vector_store %arg4[%c0_9, %c0_10, %c0_11, %c0_12], %14 {strides = array<i32>} : memref<1x1x8x1xf32, #tpu.memory_space<vmem>>, vector<1x1x8x1xf32>,
    return
  }
  func.func @transform_0(%arg0: i32, %arg1: i32) -> (i32, i32, i32) {
    %c0_i32 = arith.constant 0 : i32
    %c0_i32_0 = arith.constant 0 : i32
    return %arg0, %c0_i32, %arg1 : i32, i32, i32
  }
  func.func @transform_1(%arg0: i32, %arg1: i32) -> (i32, i32, i32, i32) {
    %c0_i32 = arith.constant 0 : i32
    %c0_i32_0 = arith.constant 0 : i32
    %c0_i32_1 = arith.constant 0 : i32
    return %arg0, %arg1, %c0_i32, %c0_i32_0 : i32, i32, i32, i32
  }
  func.func @transform_2(%arg0: i32, %arg1: i32) -> (i32, i32, i32, i32) {
    %c0_i32 = arith.constant 0 : i32
    %c0_i32_0 = arith.constant 0 : i32
    %c0_i32_1 = arith.constant 0 : i32
    return %arg0, %arg1, %c0_i32, %c0_i32_0 : i32, i32, i32, i32
  }
}

</mosaic_0001>

<llo_original>
// kernel: tpu_custom_call.1
$region0: #{tpu_custom_call.1}
  #allocation0 [shape = 'u32[]', space=smem, size = 0x4, offset = 0x4, fixed_abs, tag = 'smem constant byte address 0x4 - core index']
  #allocation1 [shape = 'u32[144,128]{1,0:T(1,128)}', space=vmem, size = 0x12000, scoped, tag = 'internal scratch']
  %s0 = inlined_call_operand.hbm [shape: f32[2,8,256], index: 0, kind: input, shape index: {}]
  %s1 = inlined_call_operand.hbm [shape: f32[2,1,8,8], index: 1, kind: output, shape index: {0}]
  %s2 = inlined_call_operand.vmem [shape: f32[2,1,8,1], index: 2, kind: output, shape index: {1}]
  %3 = xla_tuple %s1, %s2
  %s4 = sld [smem:[#allocation0]]
  $region49: #{tpu_custom_call.1} parent=0
    _
  %s6 = ssub.s32 1, %s4
  %s7 = scalar_select 0, %s6, %s4
  $region1: #{tpu_custom_call.1} parent=0
    #allocation2 [shape = 'u8[16384]{0}', space=vmem, size = 0x4000, scoped, tag = 'input window, operand 0']
    #allocation3 [shape = 's32[2]{0}', space=sflag, size = 0x8, scoped, tag = 'scoped memory for tpu_custom_call.1']
    #allocation4 [shape = 's32[2]{0}', space=sflag, size = 0x8, scoped, tag = 'scoped memory for tpu_custom_call.1']
    #allocation5 [shape = 'u8[8192]{0}', space=vmem, size = 0x2000, scoped, tag = 'output window, operand 0']
    %8 = vsyncpa [#allocation3], 0
    %s9 = scalar_lea.sflag [#allocation3], 1
    %10 = vsyncpa %s9, 0
    %11 = vsyncpa [#allocation4], 0
    %s12 = scalar_lea.sflag [#allocation4], 1
    %13 = vsyncpa %s12, 0
    loop: start=0, step=1, limit=4
    $region2: #{tpu_custom_call.1} parent=1 // loop_pre_header
      _
    $region3: #{tpu_custom_call.1} parent=1 // loop_header
      %s15 = sphi 0, %s19
      %p16 = scmp.ge.s32.totalorder %s15, 4
      %s22 = sphi 0, %s34
      %s23 = sphi 0, %s30
      %s24 = sphi 0, %s22
      %s25 = sphi 0, %s23
      %s26 = sphi 0, %s24
      %s27 = sphi 0, %s25
      %s39 = sphi 0, %s41
      %s42 = sphi 0, %s39
      %s43 = sphi 0, %s42
      %s59 = sphi 0, %s43
      %s67 = sphi 0, %s69
      %s70 = sphi 0, %s67
      %s71 = sphi 0, %s70
      %s87 = sphi 0, %s71
      %s95 = sphi 0, %s97
      %s98 = sphi 0, %s95
      %s99 = sphi 0, %s98
      %s115 = sphi 0, %s99
    $region4: #{tpu_custom_call.1} parent=1 // loop_header_branch
      %18 = sbr.rel (%p16) target = $region8
    $region5: #{tpu_custom_call.1} parent=1 // loop_body
      %s20 = ssub.s32 %s15, 1
      %s21 = ssub.s32 %s15, 2
      %s28 = sadd.s32 1, %s23
      %p29 = scmp.ge.s32.totalorder %s28, 1
      %s30 = scalar_select %p29, 0, %s28
      %s31 = sadd.s32 1, %s22
      %s32 = scalar_select %p29, %s31, %s22
      %p33 = scmp.ge.s32.totalorder %s32, 2
      %s34 = scalar_select %p33, 0, %s32
      %s35 = ssub.s32 %s22, %s34
      %s36 = ssub.s32 %s23, %s30
      %s37 = sor.u32 %s35, %s36
      %p38 = scmp.eq.s32.totalorder %s37, 0
      %s40 = sadd.s32 %s39, 1
      %s41 = scalar_select %p38, %s39, %s40
      %p44 = pneg %p38
      %p45 = scmp.eq.s32.totalorder %s15, 1
      %p46 = por %p44, %p45
      %p47 = scmp.ne.s32.totalorder %s39, %s42
      %p48 = scmp.eq.s32.totalorder %s15, 0
      %p49 = por %p47, %p48
      %p50 = scmp.ne.s32.totalorder %s39, %s42
      %p51 = scmp.eq.s32.totalorder %s20, 1
      %p52 = por %p50, %p51
      %p53 = scmp.ne.s32.totalorder %s42, %s43
      %p54 = scmp.eq.s32.totalorder %s20, 0
      %p55 = por %p53, %p54
      %p56 = scmp.ne.s32.totalorder %s42, %s43
      %p57 = scmp.eq.s32.totalorder %s21, 1
      %p58 = por %p56, %p57
      %p60 = scmp.ne.s32.totalorder %s43, %s59
      %p61 = scmp.eq.s32.totalorder %s21, 0
      %p62 = por %p60, %p61
      %s63 = ssub.s32 %s22, %s34
      %s64 = ssub.s32 %s23, %s30
      %s65 = sor.u32 %s63, %s64
      %p66 = scmp.eq.s32.totalorder %s65, 0
      %s68 = sadd.s32 %s67, 1
      %s69 = scalar_select %p66, %s67, %s68
      %p72 = pneg %p66
      %p73 = scmp.eq.s32.totalorder %s15, 1
      %p74 = por %p72, %p73
      %p75 = scmp.ne.s32.totalorder %s67, %s70
      %p76 = scmp.eq.s32.totalorder %s15, 0
      %p77 = por %p75, %p76
      %p78 = scmp.ne.s32.totalorder %s67, %s70
      %p79 = scmp.eq.s32.totalorder %s20, 1
      %p80 = por %p78, %p79
      %p81 = scmp.ne.s32.totalorder %s70, %s71
      %p82 = scmp.eq.s32.totalorder %s20, 0
      %p83 = por %p81, %p82
      %p84 = scmp.ne.s32.totalorder %s70, %s71
      %p85 = scmp.eq.s32.totalorder %s21, 1
      %p86 = por %p84, %p85
      %p88 = scmp.ne.s32.totalorder %s71, %s87
      %p89 = scmp.eq.s32.totalorder %s21, 0
      %p90 = por %p88, %p89
      %s91 = ssub.s32 %s22, %s34
      %s92 = ssub.s32 %s23, %s30
      %s93 = sor.u32 %s91, %s92
      %p94 = scmp.eq.s32.totalorder %s93, 0
      %s96 = sadd.s32 %s95, 1
      %s97 = scalar_select %p94, %s95, %s96
      %p100 = pneg %p94
      %p101 = scmp.eq.s32.totalorder %s15, 1
      %p102 = por %p100, %p101
      %p103 = scmp.ne.s32.totalorder %s95, %s98
      %p104 = scmp.eq.s32.totalorder %s15, 0
      %p105 = por %p103, %p104
      %p106 = scmp.ne.s32.totalorder %s95, %s98
      %p107 = scmp.eq.s32.totalorder %s20, 1
      %p108 = por %p106, %p107
      %p109 = scmp.ne.s32.totalorder %s98, %s99
      %p110 = scmp.eq.s32.totalorder %s20, 0
      %p111 = por %p109, %p110
      %p112 = scmp.ne.s32.totalorder %s98, %s99
      %p113 = scmp.eq.s32.totalorder %s21, 1
      %p114 = por %p112, %p113
      %p116 = scmp.ne.s32.totalorder %s99, %s115
      %p117 = scmp.eq.s32.totalorder %s21, 0
      %p118 = por %p116, %p117
      %p119 = scmp.le.s32.totalorder 1, %s15
      %p120 = scmp.lt.s32.totalorder %s15, 3
      %p121 = pnand %p119, %p120
      %p122 = pneg %p121
      // Predicated region
      $region9: #{tpu_custom_call.1} parent=5 // pred_check
        _
      $region10: #{tpu_custom_call.1} parent=5 // pred_check_branch
        %124 = sbr.rel (%p121) target = $region12
      $region11: #{tpu_custom_call.1} parent=5 // pred_region
        %s125 = ssub.s32 %s15, 1
      $region12: #{tpu_custom_call.1} parent=5 // pred_fallthru
        _
      %p126 = scmp.lt.s32.totalorder %s15, 2
      // Predicated region
      $region13: #{tpu_custom_call.1} parent=5 // pred_check
        %p127 = pneg %p126
      $region14: #{tpu_custom_call.1} parent=5 // pred_check_branch
        %129 = sbr.rel (%p127) target = $region16
      $region15: #{tpu_custom_call.1} parent=5 // pred_region
        // Predicated region
        $region17: #{tpu_custom_call.1} parent=15 // pred_check
          %p130 = pneg %p49
        $region18: #{tpu_custom_call.1} parent=15 // pred_check_branch
          %132 = sbr.rel (%p130) target = $region20
        $region19: #{tpu_custom_call.1} parent=15 // pred_region
          %s133 = sand.u32 %s39, 1
          %s134 = scalar_lea.sflag [#allocation3], %s133
          %s135 = sand.u32 %s39, 1
          %s136 = smul.addr %s135, 16
          %s137 = scalar_lea.vmem [#allocation2], %s136
          %s138 = smul.u32 2, %s23
          %s140 = ssub.s32 256, 256
          %141 = vsyncadd %s134, %s140
          %s142 = smul.addr %s22, 2
          %s143 = sadd.s32 %s138, %s142
          %s144 = smul.addr %s143, 128
          %s145 = scalar_lea.hbm %s0, %s144
          %s147 = sshll.u32 %s137, 4
          %s148 = int_to_ptr.vmem [resolvable:$true] %s147
          %150 = dma.hbm_to_vmem [thread:$0]  %s145, 256, %s148, %s134
        $region20: #{tpu_custom_call.1} parent=15 // pred_fallthru
          _
      $region16: #{tpu_custom_call.1} parent=5 // pred_fallthru
        _
      %p151 = scmp.le.s32.totalorder 1, %s15
      %p152 = scmp.lt.s32.totalorder %s15, 3
      %p153 = pnand %p151, %p152
      %p154 = pneg %p153
      // Predicated region
      $region21: #{tpu_custom_call.1} parent=5 // pred_check
        _
      $region22: #{tpu_custom_call.1} parent=5 // pred_check_branch
        %156 = sbr.rel (%p153) target = $region24
      $region23: #{tpu_custom_call.1} parent=5 // pred_region
        %s157 = ssub.s32 %s15, 1
        %s158 = sand.u32 %s42, 1
        %s159 = scalar_lea.sflag [#allocation3], %s158
        %s160 = sand.u32 %s42, 1
        %s161 = smul.addr %s160, 16
        %s162 = scalar_lea.vmem [#allocation2], %s161
        // Predicated region
        $region25: #{tpu_custom_call.1} parent=23 // pred_check
          %p163 = pneg %p55
        $region26: #{tpu_custom_call.1} parent=23 // pred_check_branch
          %165 = sbr.rel (%p163) target = $region28
        $region27: #{tpu_custom_call.1} parent=23 // pred_region
          %166 = dma.done %s159, 256
        $region28: #{tpu_custom_call.1} parent=23 // pred_fallthru
          _
        %s167 = sand.u32 %s42, 1
        %s168 = scalar_lea.sflag [#allocation3], %s167
        %s169 = sand.u32 %s42, 1
        %s170 = smul.addr %s169, 16
        %s171 = scalar_lea.vmem [#allocation2], %s170
        %p172 = pneg %p55
        %p173 = pneg %p52
        %p174 = pneg %p83
        %p175 = pneg %p80
        %s176 = sand.u32 %s70, 1
        %s177 = scalar_lea.sflag [#allocation4], %s176
        %s178 = sand.u32 %s70, 1
        %s179 = smul.addr %s178, 8
        %s180 = scalar_lea.vmem [#allocation5], %s179
        %p181 = pneg %p111
        %p182 = pneg %p108
        %p183 = scmp.lt.s32.totalorder %s24, 1
        %s184 = scalar_select %p183, %s24, 1
        %p185 = scmp.lt.s32.totalorder %s25, 0
        %s186 = scalar_select %p185, %s25, 0
        %s187 = sadd.s32 %s186, %s184
        %s188 = smul.addr %s187, 8
        %s189 = scalar_lea.vmem %s2, %s188
        %s190 = smul.u32 2, %s25
        %p191 = scmp.lt.s32.totalorder %s24, 1
        %s192 = scalar_select %p191, %s24, 1
        %p193 = scmp.lt.s32.totalorder %s25, 0
        %s194 = scalar_select %p193, %s25, 0
        %s195 = sadd.s32 %s194, %s192
        %s196 = smul.addr %s195, 8
        %s197 = scalar_lea.vmem %s2, %s196
        %v198 = vld [vmem:[%s162] sm:$0xff]
        %v199 = vld [vmem:[%s162 + $0x8] sm:$0xff]
        %200 = vmatprep.subr.mxu0 %v199
        %201 = vmatpush1.xpose.msra.mxu0 %v198
        %202 = vmatprep.subr.mxu0 0.0
        %203 = vmatpush1.xpose.msra.mxu0 0.0
        %204 = vmatprep.subr.mxu0 0.0
        %205 = vmatpush1.xpose.msra.mxu0 0.0
        %206 = vmatprep.subr.mxu0 0.0
        %207 = vmatpush1.xpose.msra.mxu0 0.0
        %208 = vmatprep.subr.mxu0 0.0
        %209 = vmatpush1.xpose.msra.mxu0 0.0
        %210 = vmatprep.subr.mxu0 0.0
        %211 = vmatpush1.xpose.msra.mxu0 0.0
        %212 = vmatprep.subr.mxu0 0.0
        %213 = vmatpush1.xpose.msra.mxu0 0.0
        %214 = vmatprep.subr.mxu0 0.0
        %215 = vmatpush1.xpose.msra.mxu0 0.0
        %216 = vmatprep.subr.mxu0 0.0
        %217 = vmatpush1.xpose.msra.mxu0 0.0
        %218 = vmatprep.subr.mxu0 0.0
        %219 = vmatpush1.xpose.msra.mxu0 0.0
        %220 = vmatprep.subr.mxu0 0.0
        %221 = vmatpush1.xpose.msra.mxu0 0.0
        %222 = vmatprep.subr.mxu0 0.0
        %223 = vmatpush1.xpose.msra.mxu0 0.0
        %224 = vmatprep.subr.mxu0 0.0
        %225 = vmatpush1.xpose.msra.mxu0 0.0
        %226 = vmatprep.subr.mxu0 0.0
        %227 = vmatpush1.xpose.msra.mxu0 0.0
        %228 = vmatprep.subr.mxu0 0.0
        %229 = vmatpush1.xpose.msra.mxu0 0.0
        %230 = vmatprep.subr.mxu0 0.0
        %231 = vmatpush1.xpose.msra.mxu0 0.0
        %232 = vmatprep.subr.mxu0 0.0
        %233 = vmatpush1.xpose.msra.mxu0 0.0
        %234 = vmatprep.subr.mxu0 0.0
        %235 = vmatpush1.xpose.msra.mxu0 0.0
        %236 = vmatprep.subr.mxu0 0.0
        %237 = vmatpush1.xpose.msra.mxu0 0.0
        %238 = vmatprep.subr.mxu0 0.0
        %239 = vmatpush1.xpose.msra.mxu0 0.0
        %240 = vmatprep.subr.mxu0 0.0
        %241 = vmatpush1.xpose.msra.mxu0 0.0
        %242 = vmatprep.subr.mxu0 0.0
        %243 = vmatpush1.xpose.msra.mxu0 0.0
        %244 = vmatprep.subr.mxu0 0.0
        %245 = vmatpush1.xpose.msra.mxu0 0.0
        %246 = vmatprep.subr.mxu0 0.0
        %247 = vmatpush1.xpose.msra.mxu0 0.0
        %248 = vmatprep.subr.mxu0 0.0
        %249 = vmatpush1.xpose.msra.mxu0 0.0
        %250 = vmatprep.subr.mxu0 0.0
        %251 = vmatpush1.xpose.msra.mxu0 0.0
        %252 = vmatprep.subr.mxu0 0.0
        %253 = vmatpush1.xpose.msra.mxu0 0.0
        %254 = vmatprep.subr.mxu0 0.0
        %255 = vmatpush1.xpose.msra.mxu0 0.0
        %256 = vmatprep.subr.mxu0 0.0
        %257 = vmatpush1.xpose.msra.mxu0 0.0
        %258 = vmatprep.subr.mxu0 0.0
        %259 = vmatpush1.xpose.msra.mxu0 0.0
        %260 = vmatprep.subr.mxu0 0.0
        %261 = vmatpush1.xpose.msra.mxu0 0.0
        %262 = vmatprep.subr.mxu0 0.0
        %263 = vmatpush1.xpose.msra.mxu0 0.0
        %264 = vmatprep.mubr.f32.mxu0 %v199
        %265 = vmatmul.mubr.f32.gmra.mrb[0].mxu0 %v198
        %v266 = vpop.f32.mrb[0].mxu0
        %v267 = vadd.f32 0.0, %v266
        %v268 = vpop.f32.mrb[0].mxu0
        %269 = vdwg.mxu0
        %v270 = vadd.f32 %v198, %v199
        %271 = vadd.xlane.f32.xlu0 %v270
        %v272 = vpop.xlane.xlu0 %271
        %v273 = vadd.f32 %v272, 0.0
        %vm274 = vcmask 64512
        %275 = vst.msk [vmem:[%s180] sm:$0xff] %vm274, %v267
        %vm276 = vcmask 7168
        %277 = vst.msk [vmem:[%s197] sm:$0xff] %vm276, %v273
        %s278 = sand.u32 %s70, 1
        %s279 = scalar_lea.sflag [#allocation4], %s278
        %s280 = sand.u32 %s70, 1
        %s281 = smul.addr %s280, 8
        %s282 = scalar_lea.vmem [#allocation5], %s281
        %p283 = scmp.lt.s32.totalorder %s24, 1
        %s284 = scalar_select %p283, %s24, 1
        %p285 = scmp.lt.s32.totalorder %s25, 0
        %s286 = scalar_select %p285, %s25, 0
        %s287 = sadd.s32 %s286, %s284
        %s288 = smul.addr %s287, 8
        %s289 = scalar_lea.vmem %s2, %s288
        // Predicated region
        $region29: #{tpu_custom_call.1} parent=23 // pred_check
          %p290 = pneg %p80
        $region30: #{tpu_custom_call.1} parent=23 // pred_check_branch
          %292 = sbr.rel (%p290) target = $region32
        $region31: #{tpu_custom_call.1} parent=23 // pred_region
          %s294 = ssub.s32 128, 128
          %295 = vsyncadd %s279, %s294
          %s296 = sadd.s32 %s25, %s24
          %s297 = smul.addr %s296, 128
          %s298 = scalar_lea.hbm %s1, %s297
          %s300 = sshll.u32 %s282, 4
          %s301 = int_to_ptr.vmem [resolvable:$true] %s300
          %303 = dma.vmem_to_hbm [thread:$0]  %s301, 128, %s298, %s279
        $region32: #{tpu_custom_call.1} parent=23 // pred_fallthru
          _
        // Predicated region
        $region33: #{tpu_custom_call.1} parent=23 // pred_check
          %p304 = pneg %p108
        $region34: #{tpu_custom_call.1} parent=23 // pred_check_branch
          %306 = sbr.rel (%p304) target = $region36
        $region35: #{tpu_custom_call.1} parent=23 // pred_region
          _
        $region36: #{tpu_custom_call.1} parent=23 // pred_fallthru
          _
      $region24: #{tpu_custom_call.1} parent=5 // pred_fallthru
        _
      %p307 = scmp.le.s32.totalorder 2, %s15
      // Predicated region
      $region37: #{tpu_custom_call.1} parent=5 // pred_check
        %p308 = pneg %p307
      $region38: #{tpu_custom_call.1} parent=5 // pred_check_branch
        %310 = sbr.rel (%p308) target = $region40
      $region39: #{tpu_custom_call.1} parent=5 // pred_region
        %s311 = ssub.s32 %s15, 2
        // Predicated region
        $region41: #{tpu_custom_call.1} parent=39 // pred_check
          %p312 = pneg %p86
        $region42: #{tpu_custom_call.1} parent=39 // pred_check_branch
          %314 = sbr.rel (%p312) target = $region44
        $region43: #{tpu_custom_call.1} parent=39 // pred_region
          %s315 = sand.u32 %s71, 1
          %s316 = scalar_lea.sflag [#allocation4], %s315
          %s317 = sand.u32 %s71, 1
          %s318 = smul.addr %s317, 8
          %s319 = scalar_lea.vmem [#allocation5], %s318
          %320 = dma.done %s316, 128
        $region44: #{tpu_custom_call.1} parent=39 // pred_fallthru
          _
        // Predicated region
        $region45: #{tpu_custom_call.1} parent=39 // pred_check
          %p321 = pneg %p114
        $region46: #{tpu_custom_call.1} parent=39 // pred_check_branch
          %323 = sbr.rel (%p321) target = $region48
        $region47: #{tpu_custom_call.1} parent=39 // pred_region
          %p324 = scmp.lt.s32.totalorder %s26, 1
          %s325 = scalar_select %p324, %s26, 1
          %p326 = scmp.lt.s32.totalorder %s27, 0
          %s327 = scalar_select %p326, %s27, 0
          %s328 = sadd.s32 %s327, %s325
          %s329 = smul.addr %s328, 8
          %s330 = scalar_lea.vmem %s2, %s329
        $region48: #{tpu_custom_call.1} parent=39 // pred_fallthru
          _
      $region40: #{tpu_custom_call.1} parent=5 // pred_fallthru
        _
    $region6: #{tpu_custom_call.1} parent=1 // loop_footer
      %s19 = sadd.s32 1, %s15
    $region7: #{tpu_custom_call.1} parent=1 // loop_footer_branch
      %14 = sbr.rel target = $region3
    $region8: #{tpu_custom_call.1} parent=1 // loop_exit
      _
    %331 = vsyncpa [#allocation3], 1
    %s332 = scalar_lea.sflag [#allocation3], 1
    %333 = vsyncpa %s332, 1
    %334 = vsyncpa [#allocation4], 1
    %s335 = scalar_lea.sflag [#allocation4], 1
    %336 = vsyncpa %s335, 1

</llo_original>
